<compile_context>
chip_gen: v5e
topology: v5e:2x2
jax: 0.10.0
libtpu: 0.0.40
codegen_flags: <defaults>
</compile_context>

<pallas_src>
import jax
import jax.numpy as jnp
import numpy as np
from jax.experimental import pallas as pl
from jax.experimental.pallas import tpu as pltpu

BITS = 8


def _round_up(x, m):
    return (x + m - 1) // m * m


def _pick_tile(dim, max_tile, align):
    """Largest tile <= max_tile (multiple of `align`) that minimizes padding of
    `dim`; avoids the min()/round_up interaction that can ~2x-pad a dim."""
    dim = max(int(dim), 1)
    aligned = _round_up(dim, align)
    if aligned <= max_tile:
        return aligned
    n_tiles = -(-dim // max_tile)                 # ceil
    return _round_up(-(-dim // n_tiles), align)   # <= max_tile (max % align == 0)


def _tile_config():
    """Per-generation (max_tm, max_tn, max_tk). Conservative fallback if the
    hardware query is unavailable."""
    try:
        vmem_bytes = pltpu.get_tpu_info().vmem_capacity_bytes
    except Exception:
        vmem_bytes = 64 * 1024 * 1024
    if vmem_bytes >= 128 * 1024 * 1024:
        # v5e / v6e: 128 MiB VMEM -> larger output tiles (higher flop/byte).
        return 512, 768, 1024
    # v7x: only 64 MiB per TensorCore once double-buffered.
    return 512, 512, 1024


def _matmul_bias_kernel(x_ref, wt_ref, b_ref, o_ref, acc_ref):
    """Tiled bf16 matmul + bias. Dequant already folded into wt in the wrapper.

    x_ref:   (tm, tk)  bf16 VMEM  activation tile
    wt_ref:  (tk, tn)  bf16 VMEM  effective-weight tile (transposed to [K, N])
    b_ref:   (1, tn)   f32  VMEM  bias tile
    o_ref:   (tm, tn)  f32  VMEM  output tile
    acc_ref: (tm, tn)  f32  VMEM  accumulator scratch
    """
    k = pl.program_id(2)

    @pl.when(k == 0)
    def _():
        acc_ref[...] = jnp.zeros_like(acc_ref)

    acc_ref[...] += jnp.dot(
        x_ref[...], wt_ref[...], preferred_element_type=jnp.float32
    )

    @pl.when(k == pl.num_programs(2) - 1)
    def _():
        o_ref[...] = acc_ref[...] + b_ref[...]


def _minmax_qparams(w, bits=BITS):
    """torch.quantization MinMaxObserver (quint8 affine) qparams, in plain JAX."""
    qmin, qmax = 0.0, float(2 ** bits - 1)
    min_val = jnp.minimum(jnp.min(w), 0.0)
    max_val = jnp.maximum(jnp.max(w), 0.0)
    scale = (max_val - min_val) / (qmax - qmin)
    scale = jnp.maximum(scale, jnp.float32(np.finfo(np.float32).eps))
    zero_point = jnp.clip(qmin - jnp.round(min_val / scale), qmin, qmax)
    return scale.astype(jnp.float32), zero_point.astype(jnp.float32)


def _effective_weight(weight, bits=BITS):
    """emulate_int + clamp + (eval-mode) noise of IntLinear, fused once."""
    maxq = float(2 ** bits - 1)
    scale, zp = _minmax_qparams(weight, bits)
    inv_scale = 1.0 / scale
    wq = (jnp.clip(jnp.round(weight * inv_scale + zp), 0.0, maxq) - zp) * scale
    clamp_low = -scale * zp
    clamp_high = scale * (maxq - zp)
    # p = 1 at eval -> bernoulli(1 - p) mask is all zeros -> noise everywhere.
    return jnp.clip(weight, clamp_low, clamp_high) + (wq - weight)


def int_linear_forward(x, weight, bias=None, *, bits=BITS, tiles=None):
    """x: [..., K] f32, weight: [N, K] f32, bias: [N] f32 or None -> [..., N] f32."""
    orig_shape = x.shape
    N, K = weight.shape
    x2d = x.reshape(-1, K)
    M = x2d.shape[0]

    # Dequant hoisted out of the kernel: done exactly once, stored bf16,
    # pre-transposed to [K, N] so the kernel never touches the XLU.
    w_eff_t = jnp.transpose(_effective_weight(weight.astype(jnp.float32), bits))
    w_eff_t = w_eff_t.astype(jnp.bfloat16)

    if bias is None:
        bias = jnp.zeros((N,), jnp.float32)

    max_tm, max_tn, max_tk = tiles if tiles is not None else _tile_config()
    tm = _pick_tile(M, max_tm, 16)    # 16: bf16 sublane packing
    tn = _pick_tile(N, max_tn, 128)
    tk = _pick_tile(K, max_tk, 128)

    M_pad = _round_up(M, tm)
    N_pad = _round_up(N, tn)
    K_pad = _round_up(K, tk)

    # Keep both v7x TensorCores busy: if the grid collapses to one parallel
    # tile, split the N (or M) axis when there is room to do so.
    if (M_pad // tm) * (N_pad // tn) == 1:
        if tn >= 256:
            tn = _pick_tile(N, (tn // 2 // 128) * 128, 128)
            N_pad = _round_up(N, tn)
        elif tm >= 32:
            tm = _pick_tile(M, (tm // 2 // 16) * 16, 16)
            M_pad = _round_up(M, tm)

    # bf16 zero padding is inert for the matmul; output is sliced back below.
    xp = jnp.pad(x2d.astype(jnp.bfloat16), ((0, M_pad - M), (0, K_pad - K)))
    wtp = jnp.pad(w_eff_t, ((0, K_pad - K), (0, N_pad - N)))
    bp = jnp.pad(bias.astype(jnp.float32), (0, N_pad - N)).reshape(1, N_pad)

    grid = (M_pad // tm, N_pad // tn, K_pad // tk)

    out = pl.pallas_call(
        _matmul_bias_kernel,
        out_shape=jax.ShapeDtypeStruct((M_pad, N_pad), jnp.float32),
        grid=grid,
        in_specs=[
            pl.BlockSpec((tm, tk), lambda i, j, k: (i, k)),   # x (bf16)
            # If the weight DMA becomes exposed, add pipeline_mode=pl.Buffered(3).
            pl.BlockSpec((tk, tn), lambda i, j, k: (k, j)),   # w_eff^T (bf16)
            pl.BlockSpec((1, tn), lambda i, j, k: (0, j)),    # bias (f32)
        ],
        out_specs=pl.BlockSpec((tm, tn), lambda i, j, k: (i, j)),
        scratch_shapes=[pltpu.VMEM((tm, tn), jnp.float32)],
        compiler_params=pltpu.CompilerParams(
            dimension_semantics=("parallel", "parallel", "arbitrary"),
            vmem_limit_bytes=48 * 1024 * 1024,
        ),
        cost_estimate=pl.CostEstimate(
            flops=2 * M_pad * N_pad * K_pad,
            transcendentals=0,
            bytes_accessed=(2 * M_pad * K_pad * grid[1]     # bf16 x, re-read grid_N x
                            + 2 * K_pad * N_pad * grid[0]   # bf16 w, re-read grid_M x
                            + 4 * M_pad * N_pad             # f32 output
                            + 4 * N_pad),                   # f32 bias
        ),
    )(xp, wtp, bp)

    return out[:M, :N].reshape(*orig_shape[:-1], N)


def _reference_forward(x, weight, bias):
    """Pure-JAX reference matching the eval-mode torch forward, with the same
    bf16 operand truncation the kernel uses (f32 accumulation)."""
    w_eff = _effective_weight(weight.astype(jnp.float32))
    xb = x.astype(jnp.bfloat16).astype(jnp.float32)
    wb = w_eff.astype(jnp.bfloat16).astype(jnp.float32)
    out = jnp.einsum("...k,nk->...n", xb, wb)
    if bias is not None:
        out = out + bias
    return out


if __name__ == "__main__":
    key = jax.random.PRNGKey(0)
    k_w, k_x, k_b = jax.random.split(key, 3)

    batch, seq = 2, 8
    in_features, out_features = 32, 64

    # xavier_uniform_ init for weight [out_features, in_features]
    bound = float(np.sqrt(6.0 / (in_features + out_features)))
    weight = jax.random.uniform(
        k_w, (out_features, in_features), dtype=jnp.float32,
        minval=-bound, maxval=bound)
    bias = 0.1 * jax.random.normal(k_b, (out_features,), dtype=jnp.float32)

    x = jax.random.normal(k_x, (batch, seq, in_features), dtype=jnp.float32)

    out = int_linear_forward(x, weight, bias)
    out = jax.block_until_ready(out)

    ref = _reference_forward(x, weight, bias)
    assert out.shape == (batch, seq, out_features)
    np.testing.assert_allclose(np.asarray(out), np.asarray(ref),
                               rtol=1e-3, atol=1e-3)

    print("KERNEL_OK")
</pallas_src>

<mosaic_0001>
module attributes {stable_mosaic.version = 11 : i64} {
  func.func @_matmul_bias_kernel(%arg0: i32, %arg1: i32, %arg2: i32, %arg3: memref<16x128xbf16, #tpu.memory_space<vmem>>, %arg4: memref<128x128xbf16, #tpu.memory_space<vmem>>, %arg5: memref<1x128xf32, #tpu.memory_space<vmem>>, %arg6: memref<16x128xf32, #tpu.memory_space<vmem>>, %arg7: memref<16x128xf32, #tpu.memory_space<vmem>>) attributes {dimension_semantics = [#tpu.dimension_semantics<parallel>, #tpu.dimension_semantics<parallel>, #tpu.dimension_semantics<arbitrary>], iteration_bounds = array<i64: 1, 1, 1>, scalar_prefetch = 0 : i64, scratch_operands = 1 : i64, tpu.core_type = #tpu.core_type<tc>, window_params = [{transform_indices = @transform_0, window_bounds = array<i64: 16, 128>}, {transform_indices = @transform_1, window_bounds = array<i64: 128, 128>}, {transform_indices = @transform_2, window_bounds = array<i64: 1, 128>}, {transform_indices = @transform_3, window_bounds = array<i64: 16, 128>}]} {
    %c0_i32 = arith.constant 0 : i32
    %0 = arith.cmpi eq, %arg2, %c0_i32 : i32
    %1 = arith.extui %0 : i1 to i32
    %c0_i32_0 = arith.constant 0 : i32
    %2 = arith.cmpi ne, %1, %c0_i32_0 : i32
    scf.if %2 {
      %cst_10 = arith.constant 0.000000e+00 : f32
      %12 = vector.broadcast %cst_10 : f32 to vector<16x128xf32>
      %c0_11 = arith.constant 0 : index
      %c0_12 = arith.constant 0 : index
      %13 = vector.load %arg7[%c0_11, %c0_12] : memref<16x128xf32, #tpu.memory_space<vmem>>, vector<16x128xf32>
      tpu.vector_store %arg7[%c0_11, %c0_12], %12 {strides = array<i32>} : memref<16x128xf32, #tpu.memory_space<vmem>>, vector<16x128xf32>,
    } else {
    }
    %c0 = arith.constant 0 : index
    %c0_1 = arith.constant 0 : index
    %3 = vector.load %arg7[%c0, %c0_1] : memref<16x128xf32, #tpu.memory_space<vmem>>, vector<16x128xf32>
    %c0_2 = arith.constant 0 : index
    %c0_3 = arith.constant 0 : index
    %4 = vector.load %arg3[%c0_2, %c0_3] : memref<16x128xbf16, #tpu.memory_space<vmem>>, vector<16x128xbf16>
    %c0_4 = arith.constant 0 : index
    %c0_5 = arith.constant 0 : index
    %5 = vector.load %arg4[%c0_4, %c0_5] : memref<128x128xbf16, #tpu.memory_space<vmem>>, vector<128x128xbf16>
    %cst = arith.constant dense<0.000000e+00> : vector<16x128xf32>
    %6 = tpu.matmul %4, %5, %cst {dimension_numbers = #tpu.dot_dimension_numbers<[1], [0], [0], [1], [0, 0, 1, 1], [], []>} : vector<16x128xbf16>, vector<128x128xbf16>, vector<16x128xf32> -> vector<16x128xf32>
    %7 = arith.addf %3, %6 : vector<16x128xf32>
    %c0_6 = arith.constant 0 : index
    %c0_7 = arith.constant 0 : index
    %8 = vector.load %arg7[%c0_6, %c0_7] : memref<16x128xf32, #tpu.memory_space<vmem>>, vector<16x128xf32>
    tpu.vector_store %arg7[%c0_6, %c0_7], %7 {strides = array<i32>} : memref<16x128xf32, #tpu.memory_space<vmem>>, vector<16x128xf32>,
    %c0_i32_8 = arith.constant 0 : i32
    %9 = arith.cmpi eq, %arg2, %c0_i32_8 : i32
    %10 = arith.extui %9 : i1 to i32
    %c0_i32_9 = arith.constant 0 : i32
    %11 = arith.cmpi ne, %10, %c0_i32_9 : i32
    scf.if %11 {
      %c0_10 = arith.constant 0 : index
      %c0_11 = arith.constant 0 : index
      %12 = vector.load %arg7[%c0_10, %c0_11] : memref<16x128xf32, #tpu.memory_space<vmem>>, vector<16x128xf32>
      %c0_12 = arith.constant 0 : index
      %c0_13 = arith.constant 0 : index
      %13 = vector.load %arg5[%c0_12, %c0_13] : memref<1x128xf32, #tpu.memory_space<vmem>>, vector<1x128xf32>
      %14 = vector.broadcast %13 : vector<1x128xf32> to vector<16x128xf32>
      %15 = arith.addf %12, %14 : vector<16x128xf32>
      %c0_14 = arith.constant 0 : index
      %c0_15 = arith.constant 0 : index
      %16 = vector.load %arg6[%c0_14, %c0_15] : memref<16x128xf32, #tpu.memory_space<vmem>>, vector<16x128xf32>
      tpu.vector_store %arg6[%c0_14, %c0_15], %15 {strides = array<i32>} : memref<16x128xf32, #tpu.memory_space<vmem>>, vector<16x128xf32>,
    } else {
    }
    return
  }
  func.func @transform_0(%arg0: i32, %arg1: i32, %arg2: i32) -> (i32, i32) {
    %c0_i32 = arith.constant 0 : i32
    return %arg0, %arg2 : i32, i32
  }
  func.func @transform_1(%arg0: i32, %arg1: i32, %arg2: i32) -> (i32, i32) {
    %c0_i32 = arith.constant 0 : i32
    return %arg2, %arg1 : i32, i32
  }
  func.func @transform_2(%arg0: i32, %arg1: i32, %arg2: i32) -> (i32, i32) {
    %c0_i32 = arith.constant 0 : i32
    %c0_i32_0 = arith.constant 0 : i32
    return %c0_i32, %arg1 : i32, i32
  }
  func.func @transform_3(%arg0: i32, %arg1: i32, %arg2: i32) -> (i32, i32) {
    %c0_i32 = arith.constant 0 : i32
    return %arg0, %arg1 : i32, i32
  }
}

</mosaic_0001>

<llo_original>
// kernel: tpu_custom_call.1
$region0: #{tpu_custom_call.1}
  #allocation0 [shape = 'u32[]', space=smem, size = 0x4, offset = 0x4, fixed_abs, tag = 'smem constant byte address 0x4 - core index']
  #allocation1 [shape = 'u32[72,128]{1,0:T(1,128)}', space=vmem, size = 0x9000, scoped, tag = 'internal scratch']
  #allocation2 [shape = 'f32[16,128]{1,0:T(8,128)}', space=vmem, size = 0x2000, scoped, tag = 'scratch operand']
  %s0 = inlined_call_operand.hbm [shape: bf16[16,128], index: 0, kind: input, shape index: {}]
  %s1 = inlined_call_operand.hbm [shape: bf16[128,128], index: 1, kind: input, shape index: {}]
  %s2 = inlined_call_operand.vmem [shape: f32[1,128], index: 2, kind: input, shape index: {}]
  %s3 = inlined_call_operand.hbm [shape: f32[16,128], index: 3, kind: output, shape index: {}]
  %s4 = sld [smem:[#allocation0]]
  $region38: #{tpu_custom_call.1} parent=0
    _
  %s6 = ssub.s32 1, %s4
  %s7 = scalar_select 0, %s6, %s4
  $region1: #{tpu_custom_call.1} parent=0
    #allocation3 [shape = 'u8[4096]{0}', space=vmem, size = 0x1000, scoped, tag = 'input window, operand 0, single buffered']
    #allocation4 [shape = 's32[1]{0}', space=sflag, size = 0x4, scoped, tag = 'scoped memory for tpu_custom_call.1']
    #allocation5 [shape = 's32[1]{0}', space=sflag, size = 0x4, scoped, tag = 'scoped memory for tpu_custom_call.1']
    #allocation6 [shape = 'u8[32768]{0}', space=vmem, size = 0x8000, scoped, tag = 'input window, operand 1, single buffered']
    #allocation7 [shape = 's32[1]{0}', space=sflag, size = 0x4, scoped, tag = 'scoped memory for tpu_custom_call.1']
    #allocation8 [shape = 'u8[8192]{0}', space=vmem, size = 0x2000, scoped, tag = 'output window, operand 0, single buffered']
    %8 = vsyncpa [#allocation4], 0
    %9 = vsyncpa [#allocation7], 0
    %10 = vsyncpa [#allocation5], 0
    // Predicated region
    $region2: #{tpu_custom_call.1} parent=1 // pred_check
      _
    $region3: #{tpu_custom_call.1} parent=1 // pred_check_branch
      %12 = sbr.rel (0) target = $region5
    $region4: #{tpu_custom_call.1} parent=1 // pred_region
      %14 = vsyncadd [#allocation4], 0
      %s15 = sshll.u32 %s0, 4
      %s16 = int_to_ptr.hbm [resolvable:$true] %s15
      %s17 = sshll.u32 [#allocation3], 4
      %s18 = int_to_ptr.vmem [resolvable:$true] %s17
      %23 = dma.hbm_to_vmem [thread:$0]  %s16, 128, %s18, [#allocation4], 64, 64, 4
    $region5: #{tpu_custom_call.1} parent=1 // pred_fallthru
      _
    // Predicated region
    $region6: #{tpu_custom_call.1} parent=1 // pred_check
      _
    $region7: #{tpu_custom_call.1} parent=1 // pred_check_branch
      %25 = sbr.rel (0) target = $region9
    $region8: #{tpu_custom_call.1} parent=1 // pred_region
      %27 = vsyncadd [#allocation7], 0
      %s28 = sshll.u32 %s1, 4
      %s29 = int_to_ptr.hbm [resolvable:$true] %s28
      %s30 = sshll.u32 [#allocation6], 4
      %s31 = int_to_ptr.vmem [resolvable:$true] %s30
      %36 = dma.hbm_to_vmem [thread:$0]  %s29, 1024, %s31, [#allocation7], 64, 64, 4
    $region9: #{tpu_custom_call.1} parent=1 // pred_fallthru
      _
    // Predicated region
    $region10: #{tpu_custom_call.1} parent=1 // pred_check
      _
    $region11: #{tpu_custom_call.1} parent=1 // pred_check_branch
      %38 = sbr.rel (0) target = $region13
    $region12: #{tpu_custom_call.1} parent=1 // pred_region
      _
    $region13: #{tpu_custom_call.1} parent=1 // pred_fallthru
      _
    // Predicated region
    $region14: #{tpu_custom_call.1} parent=1 // pred_check
      _
    $region15: #{tpu_custom_call.1} parent=1 // pred_check_branch
      %40 = sbr.rel (0) target = $region17
    $region16: #{tpu_custom_call.1} parent=1 // pred_region
      %42 = dma.done [#allocation4], 128
    $region17: #{tpu_custom_call.1} parent=1 // pred_fallthru
      _
    // Predicated region
    $region18: #{tpu_custom_call.1} parent=1 // pred_check
      _
    $region19: #{tpu_custom_call.1} parent=1 // pred_check_branch
      %44 = sbr.rel (0) target = $region21
    $region20: #{tpu_custom_call.1} parent=1 // pred_region
      %46 = dma.done [#allocation7], 1024
    $region21: #{tpu_custom_call.1} parent=1 // pred_fallthru
      _
    %p47 = scmp.eq.s32.totalorder 0, 0
    // Predicated region
    $region22: #{tpu_custom_call.1} parent=1 // pred_check
      %p48 = pneg %p47
    $region23: #{tpu_custom_call.1} parent=1 // pred_check_branch
      %50 = sbr.rel (%p48) target = $region25
    $region24: #{tpu_custom_call.1} parent=1 // pred_region
      %51 = vst [vmem:[#allocation2] sm:$0xff] 0.0
      %52 = vst [vmem:[#allocation2 + $0x8] sm:$0xff] 0.0
    $region25: #{tpu_custom_call.1} parent=1 // pred_fallthru
      _
    %v53 = vld [vmem:[#allocation2] sm:$0xff]
    %v54 = vld [vmem:[#allocation2 + $0x8] sm:$0xff]
    %v55 = vld [vmem:[#allocation3] sm:$0xf]
    %v56 = vld [vmem:[#allocation3 + $0x4] sm:$0xf]
    %v57 = vld [vmem:[#allocation6] sm:$0xf]
    %v58 = vld [vmem:[#allocation6 + $0x4] sm:$0xf]
    %v59 = vld [vmem:[#allocation6 + $0x8] sm:$0xf]
    %v60 = vld [vmem:[#allocation6 + $0xc] sm:$0xf]
    %v61 = vld [vmem:[#allocation6 + $0x10] sm:$0xf]
    %v62 = vld [vmem:[#allocation6 + $0x14] sm:$0xf]
    %v63 = vld [vmem:[#allocation6 + $0x18] sm:$0xf]
    %v64 = vld [vmem:[#allocation6 + $0x1c] sm:$0xf]
    %v65 = vld [vmem:[#allocation6 + $0x20] sm:$0xf]
    %v66 = vld [vmem:[#allocation6 + $0x24] sm:$0xf]
    %v67 = vld [vmem:[#allocation6 + $0x28] sm:$0xf]
    %v68 = vld [vmem:[#allocation6 + $0x2c] sm:$0xf]
    %v69 = vld [vmem:[#allocation6 + $0x30] sm:$0xf]
    %v70 = vld [vmem:[#allocation6 + $0x34] sm:$0xf]
    %v71 = vld [vmem:[#allocation6 + $0x38] sm:$0xf]
    %v72 = vld [vmem:[#allocation6 + $0x3c] sm:$0xf]
    %v75 = vunpack.c.l.b16 %v55
    %v76 = vunpack.c.l.b16 %v56
    %v77 = vpack.c.b16 %v76, %v75
    %v95 = vunpack.c.l.b16 %v57
    %v96 = vunpack.c.l.b16 %v58
    %v97 = vunpack.c.l.b16 %v59
    %v98 = vunpack.c.l.b16 %v60
    %v99 = vunpack.c.l.b16 %v61
    %v100 = vunpack.c.l.b16 %v62
    %v101 = vunpack.c.l.b16 %v63
    %v102 = vunpack.c.l.b16 %v64
    %v103 = vunpack.c.l.b16 %v65
    %v104 = vunpack.c.l.b16 %v66
    %v105 = vunpack.c.l.b16 %v67
    %v106 = vunpack.c.l.b16 %v68
    %v107 = vunpack.c.l.b16 %v69
    %v108 = vunpack.c.l.b16 %v70
    %v109 = vunpack.c.l.b16 %v71
    %v110 = vunpack.c.l.b16 %v72
    %v111 = vpack.c.b16 %v96, %v95
    %v112 = vpack.c.b16 %v98, %v97
    %v113 = vpack.c.b16 %v100, %v99
    %v114 = vpack.c.b16 %v102, %v101
    %v115 = vpack.c.b16 %v104, %v103
    %v116 = vpack.c.b16 %v106, %v105
    %v117 = vpack.c.b16 %v108, %v107
    %v118 = vpack.c.b16 %v110, %v109
    %127 = vmatpush.bf16.msra.mxu0 %v118
    %128 = vmatpush.bf16.msra.mxu0 %v117
    %129 = vmatpush.bf16.msra.mxu0 %v116
    %130 = vmatpush.bf16.msra.mxu0 %v115
    %131 = vmatpush.bf16.msra.mxu0 %v114
    %132 = vmatpush.bf16.msra.mxu0 %v113
    %133 = vmatpush.bf16.msra.mxu0 %v112
    %134 = vmatpush.bf16.msra.mxu0 %v111
    %135 = vmatmul.bf16.gmra.mxu0 %v77
    %v136 = vpop.f32.mrf.mxu0
    %v137 = vadd.f32 0.0, %v136
    %v138 = vpop.f32.mrf.mxu0
    %v139 = vadd.f32 0.0, %v138
    %140 = vdwg.mxu0
    %v141 = vadd.f32 %v53, %v137
    %v142 = vadd.f32 %v54, %v139
    %143 = vst [vmem:[#allocation2] sm:$0xff] %v141
    %144 = vst [vmem:[#allocation2 + $0x8] sm:$0xff] %v142
    // Predicated region
    $region26: #{tpu_custom_call.1} parent=1 // pred_check
      %p145 = pneg %p47
    $region27: #{tpu_custom_call.1} parent=1 // pred_check_branch
      %147 = sbr.rel (%p145) target = $region29
    $region28: #{tpu_custom_call.1} parent=1 // pred_region
      %v148 = vld [vmem:[#allocation2] sm:$0xff]
      %v149 = vld [vmem:[#allocation2 + $0x8] sm:$0xff]
      %v150 = vld [vmem:[%s2] sm:$0x1]
      %v152 = vperm.slane %v150, 0
      %v154 = vadd.f32 %v148, %v152
      %v155 = vadd.f32 %v149, %v152
      %156 = vst [vmem:[#allocation8] sm:$0xff] %v154
      %157 = vst [vmem:[#allocation8 + $0x8] sm:$0xff] %v155
    $region29: #{tpu_custom_call.1} parent=1 // pred_fallthru
      _
    // Predicated region
    $region30: #{tpu_custom_call.1} parent=1 // pred_check
      _
    $region31: #{tpu_custom_call.1} parent=1 // pred_check_branch
      %159 = sbr.rel (0) target = $region33
    $region32: #{tpu_custom_call.1} parent=1 // pred_region
      %161 = vsyncadd [#allocation5], 0
      %s162 = sshll.u32 [#allocation8], 4
      %s163 = int_to_ptr.vmem [resolvable:$true] %s162
      %s164 = sshll.u32 %s3, 4
      %s165 = int_to_ptr.hbm [resolvable:$true] %s164
      %170 = dma.vmem_to_hbm [thread:$0]  %s163, 256, %s165, [#allocation5], 128, 128, 8
    $region33: #{tpu_custom_call.1} parent=1 // pred_fallthru
      _
    // Predicated region
    $region34: #{tpu_custom_call.1} parent=1 // pred_check
      _
    $region35: #{tpu_custom_call.1} parent=1 // pred_check_branch
      %172 = sbr.rel (0) target = $region37
    $region36: #{tpu_custom_call.1} parent=1 // pred_region
      %174 = dma.done [#allocation5], 256
    $region37: #{tpu_custom_call.1} parent=1 // pred_fallthru
      _
    %175 = vsyncpa [#allocation4], 1
    %176 = vsyncpa [#allocation7], 1
    %177 = vsyncpa [#allocation5], 1

</llo_original>
